<compile_context>
chip_gen: v6e
topology: v6e:2x2x1
jax: 0.10.0
libtpu: 0.0.40
codegen_flags: <defaults>
</compile_context>

<pallas_src>
import jax
import jax.numpy as jnp
from jax.experimental import pallas as pl
from jax.experimental.pallas import tpu as pltpu


LN_EPS = 1e-5  # PyTorch nn.LayerNorm default eps


def _round_up(x, m):
    return ((x + m - 1) // m) * m


def _actor_kernel(x_ref, w1_ref, w2_ref, w3_ref, vec_ref, b3_ref, out_ref):
    """Fused Linear->LN->ReLU->Linear->LN->ReLU->Linear->Tanh for one batch tile.

    vec_ref packs [b1; g1; bt1; b2; g2; bt2] as a [6, H] slab.
    w3_ref / b3_ref / out_ref are lane-padded to a multiple of 128.
    """
    x = x_ref[...]                      # [tile_b, Din]
    H = w1_ref.shape[1]
    inv_h = 1.0 / float(H)

    b1 = vec_ref[0:1, :]
    g1 = vec_ref[1:2, :]
    bt1 = vec_ref[2:3, :]
    b2 = vec_ref[3:4, :]
    g2 = vec_ref[4:5, :]
    bt2 = vec_ref[5:6, :]

    def ln_relu(h, g, bt):
        # Two-pass LayerNorm (mean-subtracted variance): numerically robust
        # and matches the PyTorch reference form.
        mu = jnp.sum(h, axis=-1, keepdims=True) * inv_h
        c = h - mu
        var = jnp.sum(c * c, axis=-1, keepdims=True) * inv_h
        hn = c * jax.lax.rsqrt(var + LN_EPS)
        return jnp.maximum(hn * g + bt, 0.0)

    h1 = jnp.dot(x, w1_ref[...], preferred_element_type=jnp.float32) + b1
    a1 = ln_relu(h1, g1, bt1)
    h2 = jnp.dot(a1, w2_ref[...], preferred_element_type=jnp.float32) + b2
    a2 = ln_relu(h2, g2, bt2)
    # Lane-padded last layer: padded columns of w3/b3 are zero -> tanh(0)=0.
    h3 = jnp.dot(a2, w3_ref[...], preferred_element_type=jnp.float32) + b3_ref[...]
    out_ref[...] = jnp.tanh(h3).astype(out_ref.dtype)


def multi_step_actor_forward(obs_feature, params, *, pred_steps, action_dim,
                             block_b=1024):
    """JAX wrapper: tiles the batch, lane-pads the output layer, calls Pallas.

    obs_feature: [B, input_dim] float32
    params: dict with w1 [Din,H], w2 [H,H], w3 [H,A*P], b1/g1/bt1/b2/g2/bt2 [1,H],
            b3 [1, A*P]  (weights stored input-major, i.e. already transposed
            relative to torch.nn.Linear.weight).
    Returns actions [B, pred_steps, action_dim] float32.
    """
    B, Din = obs_feature.shape
    H = params["w1"].shape[1]
    Aout = action_dim * pred_steps
    Aout_pad = _round_up(Aout, 128)          # lane-dense output slab

    # Batch tile: multiple of 8 sublanes; for small B the whole (padded) batch
    # is one tile so the grid is a single step.  For large B, grid has >= 2
    # "parallel" steps which shard across v7x's two TensorCores.
    tile_b = max(8, min(_round_up(block_b, 8), _round_up(B, 8)))
    Bp = _round_up(B, tile_b)
    x = obs_feature
    if Bp != B:
        # Padded rows are zeros; their outputs are discarded below.
        x = jnp.pad(x, ((0, Bp - B), (0, 0)))

    # Pack the six (1, H) vectors into one operand -> fewer DMAs per grid step.
    vecs = jnp.concatenate(
        [params["b1"], params["g1"], params["bt1"],
         params["b2"], params["g2"], params["bt2"]], axis=0)  # [6, H]

    # Zero-pad the last layer to 128 output lanes (free reshape-level glue).
    w3p = params["w3"]
    b3p = params["b3"]
    if Aout_pad != Aout:
        w3p = jnp.pad(w3p, ((0, 0), (0, Aout_pad - Aout)))
        b3p = jnp.pad(b3p, ((0, 0), (0, Aout_pad - Aout)))

    grid = (pl.cdiv(Bp, tile_b),)

    flops = 2 * Bp * (Din * H + H * H + H * Aout_pad)
    bytes_accessed = 4 * (Bp * Din + Din * H + H * H + H * Aout_pad
                          + 6 * H + Aout_pad + Bp * Aout_pad)
    transcendentals = Bp * (2 + Aout_pad)  # rsqrt rows + tanh per output elem

    # VMEM budget: double-buffered inputs/output + headroom for intermediates.
    weight_bytes = 4 * (Din * H + H * H + H * Aout_pad + 6 * H + Aout_pad)
    tile_bytes = 4 * tile_b * (Din + Aout_pad)
    vmem_needed = 2 * (weight_bytes + tile_bytes) + 4 * 4 * tile_b * H
    vmem_limit = None
    if vmem_needed > (32 << 20):
        # Budget against v7x's 64 MiB physical VMEM, with headroom.
        vmem_limit = min(vmem_needed + (4 << 20), 60 << 20)

    out = pl.pallas_call(
        _actor_kernel,
        out_shape=jax.ShapeDtypeStruct((Bp, Aout_pad), jnp.float32),
        grid=grid,
        in_specs=[
            pl.BlockSpec((tile_b, Din), lambda i: (i, 0)),    # activations: tiled
            pl.BlockSpec((Din, H), lambda i: (0, 0)),         # w1: resident
            pl.BlockSpec((H, H), lambda i: (0, 0)),           # w2: resident
            pl.BlockSpec((H, Aout_pad), lambda i: (0, 0)),    # w3 (lane-padded)
            pl.BlockSpec((6, H), lambda i: (0, 0)),           # packed vectors
            pl.BlockSpec((1, Aout_pad), lambda i: (0, 0)),    # b3 (lane-padded)
        ],
        out_specs=pl.BlockSpec((tile_b, Aout_pad), lambda i: (i, 0)),
        compiler_params=pltpu.CompilerParams(
            dimension_semantics=("parallel",),
            vmem_limit_bytes=vmem_limit),
        cost_estimate=pl.CostEstimate(
            flops=flops,
            transcendentals=transcendentals,
            bytes_accessed=bytes_accessed),
    )(x, params["w1"], params["w2"], w3p, vecs, b3p)

    # Glue: drop batch padding + lane padding, present the [B, P, A] view.
    return out[:B, :Aout].reshape(B, pred_steps, action_dim)


def init_params(key, input_dim, action_dim, pred_steps, hidden_dim):
    """Deterministic init mimicking PyTorch Linear / LayerNorm defaults."""
    H = hidden_dim
    Aout = action_dim * pred_steps
    ks = jax.random.split(key, 6)

    def lin(kw, kb, fan_in, fan_out):
        bound = 1.0 / jnp.sqrt(fan_in)
        w = jax.random.uniform(kw, (fan_in, fan_out), jnp.float32, -bound, bound)
        b = jax.random.uniform(kb, (1, fan_out), jnp.float32, -bound, bound)
        return w, b

    w1, b1 = lin(ks[0], ks[1], input_dim, H)
    w2, b2 = lin(ks[2], ks[3], H, H)
    w3, b3 = lin(ks[4], ks[5], H, Aout)
    return {
        "w1": w1, "b1": b1, "g1": jnp.ones((1, H), jnp.float32),
        "bt1": jnp.zeros((1, H), jnp.float32),
        "w2": w2, "b2": b2, "g2": jnp.ones((1, H), jnp.float32),
        "bt2": jnp.zeros((1, H), jnp.float32),
        "w3": w3, "b3": b3,
    }


def _reference_forward(obs_feature, params, pred_steps, action_dim):
    """Plain-JAX reference matching PyTorch semantics."""
    def ln(h, g, bt):
        mu = jnp.mean(h, axis=-1, keepdims=True)
        var = jnp.mean((h - mu) ** 2, axis=-1, keepdims=True)
        return (h - mu) / jnp.sqrt(var + LN_EPS) * g + bt

    a1 = jnp.maximum(ln(obs_feature @ params["w1"] + params["b1"],
                        params["g1"], params["bt1"]), 0.0)
    a2 = jnp.maximum(ln(a1 @ params["w2"] + params["b2"],
                        params["g2"], params["bt2"]), 0.0)
    out = jnp.tanh(a2 @ params["w3"] + params["b3"])
    return out.reshape(obs_feature.shape[0], pred_steps, action_dim)


if __name__ == "__main__":
    # Small shapes consistent with the module's forward.
    batch = 64
    input_dim = 24
    action_dim = 4
    pred_steps = 2
    hidden_dim = 128

    key = jax.random.PRNGKey(0)
    k_obs, k_par = jax.random.split(key)

    obs_feature = jax.random.normal(k_obs, (batch, input_dim), jnp.float32)
    params = init_params(k_par, input_dim, action_dim, pred_steps, hidden_dim)
    ref = _reference_forward(obs_feature, params, pred_steps, action_dim)

    # 1) Default config: whole batch in one tile, single grid step.
    actions = multi_step_actor_forward(
        obs_feature, params, pred_steps=pred_steps, action_dim=action_dim)
    jax.block_until_ready(actions)
    assert actions.shape == (batch, pred_steps, action_dim)
    assert jnp.allclose(actions, ref, atol=1e-5, rtol=1e-5)

    # 2) Small tile so the demo also exercises a multi-step "parallel" grid.
    actions_tiled = multi_step_actor_forward(
        obs_feature, params, pred_steps=pred_steps, action_dim=action_dim,
        block_b=16)
    jax.block_until_ready(actions_tiled)
    assert jnp.allclose(actions_tiled, ref, atol=1e-5, rtol=1e-5)

    print("KERNEL_OK")
</pallas_src>

<mosaic_0001>
module attributes {stable_mosaic.version = 11 : i64} {
  func.func @_actor_kernel(%arg0: i32, %arg1: memref<64x24xf32, #tpu.memory_space<vmem>>, %arg2: memref<24x128xf32, #tpu.memory_space<vmem>>, %arg3: memref<128x128xf32, #tpu.memory_space<vmem>>, %arg4: memref<128x128xf32, #tpu.memory_space<vmem>>, %arg5: memref<6x128xf32, #tpu.memory_space<vmem>>, %arg6: memref<1x128xf32, #tpu.memory_space<vmem>>, %arg7: memref<64x128xf32, #tpu.memory_space<vmem>>) attributes {dimension_semantics = [#tpu.dimension_semantics<parallel>], iteration_bounds = array<i64: 1>, scalar_prefetch = 0 : i64, scratch_operands = 0 : i64, tpu.core_type = #tpu.core_type<tc>, window_params = [{transform_indices = @transform_0, window_bounds = array<i64: 64, 24>}, {pipeline_mode = #tpu.pipeline_mode<synchronous>, transform_indices = @transform_1, window_bounds = array<i64: 24, 128>}, {pipeline_mode = #tpu.pipeline_mode<synchronous>, transform_indices = @transform_2, window_bounds = array<i64: 128, 128>}, {pipeline_mode = #tpu.pipeline_mode<synchronous>, transform_indices = @transform_3, window_bounds = array<i64: 128, 128>}, {pipeline_mode = #tpu.pipeline_mode<synchronous>, transform_indices = @transform_4, window_bounds = array<i64: 6, 128>}, {pipeline_mode = #tpu.pipeline_mode<synchronous>, transform_indices = @transform_5, window_bounds = array<i64: 1, 128>}, {transform_indices = @transform_6, window_bounds = array<i64: 64, 128>}]} {
    %c0 = arith.constant 0 : index
    %c0_0 = arith.constant 0 : index
    %0 = vector.load %arg1[%c0, %c0_0] : memref<64x24xf32, #tpu.memory_space<vmem>>, vector<64x24xf32>
    %c0_1 = arith.constant 0 : index
    %c0_2 = arith.constant 0 : index
    %1 = vector.load %arg5[%c0_1, %c0_2] : memref<6x128xf32, #tpu.memory_space<vmem>>, vector<1x128xf32>
    %c1 = arith.constant 1 : index
    %c0_3 = arith.constant 0 : index
    %2 = vector.load %arg5[%c1, %c0_3] : memref<6x128xf32, #tpu.memory_space<vmem>>, vector<1x128xf32>
    %c2 = arith.constant 2 : index
    %c0_4 = arith.constant 0 : index
    %3 = vector.load %arg5[%c2, %c0_4] : memref<6x128xf32, #tpu.memory_space<vmem>>, vector<1x128xf32>
    %c3 = arith.constant 3 : index
    %c0_5 = arith.constant 0 : index
    %4 = vector.load %arg5[%c3, %c0_5] : memref<6x128xf32, #tpu.memory_space<vmem>>, vector<1x128xf32>
    %c4 = arith.constant 4 : index
    %c0_6 = arith.constant 0 : index
    %5 = vector.load %arg5[%c4, %c0_6] : memref<6x128xf32, #tpu.memory_space<vmem>>, vector<1x128xf32>
    %c5 = arith.constant 5 : index
    %c0_7 = arith.constant 0 : index
    %6 = vector.load %arg5[%c5, %c0_7] : memref<6x128xf32, #tpu.memory_space<vmem>>, vector<1x128xf32>
    %c0_8 = arith.constant 0 : index
    %c0_9 = arith.constant 0 : index
    %7 = vector.load %arg2[%c0_8, %c0_9] : memref<24x128xf32, #tpu.memory_space<vmem>>, vector<24x128xf32>
    %cst = arith.constant dense<0.000000e+00> : vector<64x128xf32>
    %8 = tpu.matmul %0, %7, %cst {dimension_numbers = #tpu.dot_dimension_numbers<[1], [0], [0], [1], [0, 0, 1, 1], [], []>} : vector<64x24xf32>, vector<24x128xf32>, vector<64x128xf32> -> vector<64x128xf32>
    %9 = vector.broadcast %1 : vector<1x128xf32> to vector<64x128xf32>
    %10 = arith.addf %8, %9 : vector<64x128xf32>
    %cst_10 = arith.constant dense<0.000000e+00> : vector<64xf32>
    %11 = vector.multi_reduction <add>, %10, %cst_10 [1] : vector<64x128xf32> to vector<64xf32>
    %12 = vector.shape_cast %11 : vector<64xf32> to vector<64x1xf32>
    %cst_11 = arith.constant 7.812500e-03 : f32
    %13 = vector.broadcast %cst_11 : f32 to vector<64x1xf32>
    %14 = arith.mulf %12, %13 : vector<64x1xf32>
    %15 = vector.broadcast %14 : vector<64x1xf32> to vector<64x128xf32>
    %16 = arith.subf %10, %15 : vector<64x128xf32>
    %17 = arith.mulf %16, %16 : vector<64x128xf32>
    %cst_12 = arith.constant dense<0.000000e+00> : vector<64xf32>
    %18 = vector.multi_reduction <add>, %17, %cst_12 [1] : vector<64x128xf32> to vector<64xf32>
    %19 = vector.shape_cast %18 : vector<64xf32> to vector<64x1xf32>
    %cst_13 = arith.constant 7.812500e-03 : f32
    %20 = vector.broadcast %cst_13 : f32 to vector<64x1xf32>
    %21 = arith.mulf %19, %20 : vector<64x1xf32>
    %cst_14 = arith.constant 9.99999974E-6 : f32
    %22 = vector.broadcast %cst_14 : f32 to vector<64x1xf32>
    %23 = arith.addf %21, %22 : vector<64x1xf32>
    %24 = math.rsqrt %23 : vector<64x1xf32>
    %25 = vector.broadcast %24 : vector<64x1xf32> to vector<64x128xf32>
    %26 = arith.mulf %16, %25 : vector<64x128xf32>
    %27 = vector.broadcast %2 : vector<1x128xf32> to vector<64x128xf32>
    %28 = arith.mulf %26, %27 : vector<64x128xf32>
    %29 = vector.broadcast %3 : vector<1x128xf32> to vector<64x128xf32>
    %30 = arith.addf %28, %29 : vector<64x128xf32>
    %cst_15 = arith.constant 0.000000e+00 : f32
    %31 = vector.broadcast %cst_15 : f32 to vector<64x128xf32>
    %32 = arith.maximumf %30, %31 : vector<64x128xf32>
    %c0_16 = arith.constant 0 : index
    %c0_17 = arith.constant 0 : index
    %33 = vector.load %arg3[%c0_16, %c0_17] : memref<128x128xf32, #tpu.memory_space<vmem>>, vector<128x128xf32>
    %cst_18 = arith.constant dense<0.000000e+00> : vector<64x128xf32>
    %34 = tpu.matmul %32, %33, %cst_18 {dimension_numbers = #tpu.dot_dimension_numbers<[1], [0], [0], [1], [0, 0, 1, 1], [], []>} : vector<64x128xf32>, vector<128x128xf32>, vector<64x128xf32> -> vector<64x128xf32>
    %35 = vector.broadcast %4 : vector<1x128xf32> to vector<64x128xf32>
    %36 = arith.addf %34, %35 : vector<64x128xf32>
    %cst_19 = arith.constant dense<0.000000e+00> : vector<64xf32>
    %37 = vector.multi_reduction <add>, %36, %cst_19 [1] : vector<64x128xf32> to vector<64xf32>
    %38 = vector.shape_cast %37 : vector<64xf32> to vector<64x1xf32>
    %cst_20 = arith.constant 7.812500e-03 : f32
    %39 = vector.broadcast %cst_20 : f32 to vector<64x1xf32>
    %40 = arith.mulf %38, %39 : vector<64x1xf32>
    %41 = vector.broadcast %40 : vector<64x1xf32> to vector<64x128xf32>
    %42 = arith.subf %36, %41 : vector<64x128xf32>
    %43 = arith.mulf %42, %42 : vector<64x128xf32>
    %cst_21 = arith.constant dense<0.000000e+00> : vector<64xf32>
    %44 = vector.multi_reduction <add>, %43, %cst_21 [1] : vector<64x128xf32> to vector<64xf32>
    %45 = vector.shape_cast %44 : vector<64xf32> to vector<64x1xf32>
    %cst_22 = arith.constant 7.812500e-03 : f32
    %46 = vector.broadcast %cst_22 : f32 to vector<64x1xf32>
    %47 = arith.mulf %45, %46 : vector<64x1xf32>
    %cst_23 = arith.constant 9.99999974E-6 : f32
    %48 = vector.broadcast %cst_23 : f32 to vector<64x1xf32>
    %49 = arith.addf %47, %48 : vector<64x1xf32>
    %50 = math.rsqrt %49 : vector<64x1xf32>
    %51 = vector.broadcast %50 : vector<64x1xf32> to vector<64x128xf32>
    %52 = arith.mulf %42, %51 : vector<64x128xf32>
    %53 = vector.broadcast %5 : vector<1x128xf32> to vector<64x128xf32>
    %54 = arith.mulf %52, %53 : vector<64x128xf32>
    %55 = vector.broadcast %6 : vector<1x128xf32> to vector<64x128xf32>
    %56 = arith.addf %54, %55 : vector<64x128xf32>
    %cst_24 = arith.constant 0.000000e+00 : f32
    %57 = vector.broadcast %cst_24 : f32 to vector<64x128xf32>
    %58 = arith.maximumf %56, %57 : vector<64x128xf32>
    %c0_25 = arith.constant 0 : index
    %c0_26 = arith.constant 0 : index
    %59 = vector.load %arg4[%c0_25, %c0_26] : memref<128x128xf32, #tpu.memory_space<vmem>>, vector<128x128xf32>
    %cst_27 = arith.constant dense<0.000000e+00> : vector<64x128xf32>
    %60 = tpu.matmul %58, %59, %cst_27 {dimension_numbers = #tpu.dot_dimension_numbers<[1], [0], [0], [1], [0, 0, 1, 1], [], []>} : vector<64x128xf32>, vector<128x128xf32>, vector<64x128xf32> -> vector<64x128xf32>
    %c0_28 = arith.constant 0 : index
    %c0_29 = arith.constant 0 : index
    %61 = vector.load %arg6[%c0_28, %c0_29] : memref<1x128xf32, #tpu.memory_space<vmem>>, vector<1x128xf32>
    %62 = vector.broadcast %61 : vector<1x128xf32> to vector<64x128xf32>
    %63 = arith.addf %60, %62 : vector<64x128xf32>
    %64 = math.tanh %63 : vector<64x128xf32>
    %c0_30 = arith.constant 0 : index
    %c0_31 = arith.constant 0 : index
    %65 = vector.load %arg7[%c0_30, %c0_31] : memref<64x128xf32, #tpu.memory_space<vmem>>, vector<64x128xf32>
    tpu.vector_store %arg7[%c0_30, %c0_31], %64 {strides = array<i32>} : memref<64x128xf32, #tpu.memory_space<vmem>>, vector<64x128xf32>,
    return
  }
  func.func @transform_0(%arg0: i32) -> (i32, i32) {
    %c0_i32 = arith.constant 0 : i32
    %c0_i32_0 = arith.constant 0 : i32
    return %arg0, %c0_i32 : i32, i32
  }
  func.func @transform_1(%arg0: i32) -> (i32, i32) {
    %c0_i32 = arith.constant 0 : i32
    %c0_i32_0 = arith.constant 0 : i32
    %c0_i32_1 = arith.constant 0 : i32
    return %c0_i32, %c0_i32_0 : i32, i32
  }
  func.func @transform_2(%arg0: i32) -> (i32, i32) {
    %c0_i32 = arith.constant 0 : i32
    %c0_i32_0 = arith.constant 0 : i32
    %c0_i32_1 = arith.constant 0 : i32
    return %c0_i32, %c0_i32_0 : i32, i32
  }
  func.func @transform_3(%arg0: i32) -> (i32, i32) {
    %c0_i32 = arith.constant 0 : i32
    %c0_i32_0 = arith.constant 0 : i32
    %c0_i32_1 = arith.constant 0 : i32
    return %c0_i32, %c0_i32_0 : i32, i32
  }
  func.func @transform_4(%arg0: i32) -> (i32, i32) {
    %c0_i32 = arith.constant 0 : i32
    %c0_i32_0 = arith.constant 0 : i32
    %c0_i32_1 = arith.constant 0 : i32
    return %c0_i32, %c0_i32_0 : i32, i32
  }
  func.func @transform_5(%arg0: i32) -> (i32, i32) {
    %c0_i32 = arith.constant 0 : i32
    %c0_i32_0 = arith.constant 0 : i32
    %c0_i32_1 = arith.constant 0 : i32
    return %c0_i32, %c0_i32_0 : i32, i32
  }
  func.func @transform_6(%arg0: i32) -> (i32, i32) {
    %c0_i32 = arith.constant 0 : i32
    %c0_i32_0 = arith.constant 0 : i32
    return %arg0, %c0_i32 : i32, i32
  }
}

</mosaic_0001>

<llo_original>
// kernel: tpu_custom_call.1
$region0: #{tpu_custom_call.1}
  #allocation0 [shape = 'u32[]', space=smem, size = 0x4, offset = 0x4, fixed_abs, tag = 'smem constant byte address 0x4 - core index']
  #allocation1 [shape = 'u32[144,128]{1,0:T(1,128)}', space=vmem, size = 0x12000, scoped, tag = 'internal scratch']
  %s0 = inlined_call_operand.vmem [shape: f32[64,24], index: 0, kind: input, shape index: {}]
  %s1 = inlined_call_operand.vmem [shape: f32[24,128], index: 1, kind: input, shape index: {}]
  %s2 = inlined_call_operand.hbm [shape: f32[128,128], index: 2, kind: input, shape index: {}]
  %s3 = inlined_call_operand.hbm [shape: f32[128,128], index: 3, kind: input, shape index: {}]
  %s4 = inlined_call_operand.vmem [shape: f32[6,128], index: 4, kind: input, shape index: {}]
  %s5 = inlined_call_operand.vmem [shape: f32[1,128], index: 5, kind: input, shape index: {}]
  %s6 = inlined_call_operand.hbm [shape: f32[64,128], index: 6, kind: output, shape index: {}]
  %s7 = sld [smem:[#allocation0]]
  $region42: #{tpu_custom_call.1} parent=0
    _
  %s9 = ssub.s32 1, %s7
  %s10 = scalar_select 0, %s9, %s7
  $region1: #{tpu_custom_call.1} parent=0
    #allocation2 [shape = 'u8[65536]{0}', space=vmem, size = 0x10000, scoped, tag = 'input window, operand 2, single buffered']
    #allocation3 [shape = 's32[1]{0}', space=sflag, size = 0x4, scoped, tag = 'scoped memory for tpu_custom_call.1']
    #allocation4 [shape = 's32[1]{0}', space=sflag, size = 0x4, scoped, tag = 'scoped memory for tpu_custom_call.1']
    #allocation5 [shape = 'u8[65536]{0}', space=vmem, size = 0x10000, scoped, tag = 'input window, operand 3, single buffered']
    #allocation6 [shape = 's32[1]{0}', space=sflag, size = 0x4, scoped, tag = 'scoped memory for tpu_custom_call.1']
    #allocation7 [shape = 'u8[32768]{0}', space=vmem, size = 0x8000, scoped, tag = 'output window, operand 0, single buffered']
    %11 = vsyncpa [#allocation3], 0
    %12 = vsyncpa [#allocation6], 0
    %13 = vsyncpa [#allocation4], 0
    // Predicated region
    $region2: #{tpu_custom_call.1} parent=1 // pred_check
      _
    $region3: #{tpu_custom_call.1} parent=1 // pred_check_branch
      %15 = sbr.rel (0) target = $region5
    $region4: #{tpu_custom_call.1} parent=1 // pred_region
      _
    $region5: #{tpu_custom_call.1} parent=1 // pred_fallthru
      _
    // Predicated region
    $region6: #{tpu_custom_call.1} parent=1 // pred_check
      _
    $region7: #{tpu_custom_call.1} parent=1 // pred_check_branch
      %17 = sbr.rel (0) target = $region9
    $region8: #{tpu_custom_call.1} parent=1 // pred_region
      _
    $region9: #{tpu_custom_call.1} parent=1 // pred_fallthru
      _
    // Predicated region
    $region10: #{tpu_custom_call.1} parent=1 // pred_check
      _
    $region11: #{tpu_custom_call.1} parent=1 // pred_check_branch
      %19 = sbr.rel (0) target = $region13
    $region12: #{tpu_custom_call.1} parent=1 // pred_region
      %s21 = ssub.s32 2048, 2048
      %22 = vsyncadd [#allocation3], %s21
      %s23 = sshll.u32 [#allocation2], 4
      %s24 = int_to_ptr.vmem [resolvable:$true] %s23
      %29 = dma.hbm_to_vmem [thread:$0]  %s2, 2048, %s24, [#allocation3], 128, 128, 8
    $region13: #{tpu_custom_call.1} parent=1 // pred_fallthru
      _
    // Predicated region
    $region14: #{tpu_custom_call.1} parent=1 // pred_check
      _
    $region15: #{tpu_custom_call.1} parent=1 // pred_check_branch
      %31 = sbr.rel (0) target = $region17
    $region16: #{tpu_custom_call.1} parent=1 // pred_region
      %s33 = ssub.s32 2048, 2048
      %34 = vsyncadd [#allocation6], %s33
      %s35 = sshll.u32 [#allocation5], 4
      %s36 = int_to_ptr.vmem [resolvable:$true] %s35
      %41 = dma.hbm_to_vmem [thread:$0]  %s3, 2048, %s36, [#allocation6], 128, 128, 8
    $region17: #{tpu_custom_call.1} parent=1 // pred_fallthru
      _
    // Predicated region
    $region18: #{tpu_custom_call.1} parent=1 // pred_check
      _
    $region19: #{tpu_custom_call.1} parent=1 // pred_check_branch
      %43 = sbr.rel (0) target = $region21
    $region20: #{tpu_custom_call.1} parent=1 // pred_region
      _
    $region21: #{tpu_custom_call.1} parent=1 // pred_fallthru
      _
    // Predicated region
    $region22: #{tpu_custom_call.1} parent=1 // pred_check
      _
    $region23: #{tpu_custom_call.1} parent=1 // pred_check_branch
      %45 = sbr.rel (0) target = $region25
    $region24: #{tpu_custom_call.1} parent=1 // pred_region
      _
    $region25: #{tpu_custom_call.1} parent=1 // pred_fallthru
      _
    // Predicated region
    $region26: #{tpu_custom_call.1} parent=1 // pred_check
      _
    $region27: #{tpu_custom_call.1} parent=1 // pred_check_branch
      %47 = sbr.rel (0) target = $region29
    $region28: #{tpu_custom_call.1} parent=1 // pred_region
      %48 = dma.done [#allocation3], 2048
    $region29: #{tpu_custom_call.1} parent=1 // pred_fallthru
      _
    // Predicated region
    $region30: #{tpu_custom_call.1} parent=1 // pred_check
      _
    $region31: #{tpu_custom_call.1} parent=1 // pred_check_branch
      %50 = sbr.rel (0) target = $region33
    $region32: #{tpu_custom_call.1} parent=1 // pred_region
      %51 = dma.done [#allocation6], 2048
    $region33: #{tpu_custom_call.1} parent=1 // pred_fallthru
      _
    %v52 = vld [vmem:[%s0] sm:$0xff]
    %v53 = vld [vmem:[%s0 + $0x8] sm:$0xff]
    %v54 = vld [vmem:[%s0 + $0x10] sm:$0xff]
    %v55 = vld [vmem:[%s0 + $0x18] sm:$0xff]
    %v56 = vld [vmem:[%s0 + $0x20] sm:$0xff]
    %v57 = vld [vmem:[%s0 + $0x28] sm:$0xff]
    %v58 = vld [vmem:[%s0 + $0x30] sm:$0xff]
    %v59 = vld [vmem:[%s0 + $0x38] sm:$0xff]
    %v60 = vld [vmem:[%s4] sm:$0x1]
    %v61 = vld [vmem:[%s4 + $0x1] sm:$0x1]
    %v62 = vld [vmem:[%s4 + $0x2] sm:$0x1]
    %v63 = vld [vmem:[%s4 + $0x3] sm:$0x1]
    %v64 = vld [vmem:[%s4 + $0x4] sm:$0x1]
    %v65 = vld [vmem:[%s4 + $0x5] sm:$0x1]
    %v66 = vld [vmem:[%s1] sm:$0xff]
    %v67 = vld [vmem:[%s1 + $0x8] sm:$0xff]
    %v68 = vld [vmem:[%s1 + $0x10] sm:$0xff]
    %v69 = vlaneseq
    %v70 = vshrl.u32 %v69, 7
    %v71 = vsub.s32 0, %v70
    %v72 = vrot.slane %v60, %v71
    %vm73 = vcmask 195584
    %v75 = vsel %vm73, %v52, 0
    %v78 = vsel %vm73, %v53, 0
    %v81 = vsel %vm73, %v54, 0
    %v84 = vsel %vm73, %v55, 0
    %v87 = vsel %vm73, %v56, 0
    %v90 = vsel %vm73, %v57, 0
    %v93 = vsel %vm73, %v58, 0
    %v96 = vsel %vm73, %v59, 0
    %98 = vmatprep.subr.mxu0 0.0
    %99 = vmatpush1.msra.mxu0 0.0
    %100 = vmatprep.subr.mxu0 0.0
    %101 = vmatpush1.msra.mxu0 0.0
    %102 = vmatprep.subr.mxu0 0.0
    %103 = vmatpush1.msra.mxu0 0.0
    %104 = vmatprep.subr.mxu0 0.0
    %105 = vmatpush1.msra.mxu0 0.0
    %106 = vmatprep.subr.mxu0 0.0
    %107 = vmatpush1.msra.mxu0 0.0
    %108 = vmatprep.subr.mxu0 0.0
    %109 = vmatpush1.msra.mxu0 0.0
    %110 = vmatprep.subr.mxu0 0.0
    %111 = vmatpush1.msra.mxu0 0.0
    %112 = vmatprep.subr.mxu0 0.0
    %113 = vmatpush1.msra.mxu0 0.0
    %114 = vmatprep.subr.mxu0 0.0
    %115 = vmatpush1.msra.mxu0 0.0
    %116 = vmatprep.subr.mxu0 0.0
    %117 = vmatpush1.msra.mxu0 0.0
    %118 = vmatprep.subr.mxu0 0.0
    %119 = vmatpush1.msra.mxu0 0.0
    %120 = vmatprep.subr.mxu0 0.0
    %121 = vmatpush1.msra.mxu0 0.0
    %122 = vmatprep.subr.mxu0 0.0
    %123 = vmatpush1.msra.mxu0 0.0
    %124 = vmatprep.subr.mxu0 0.0
    %125 = vmatpush1.msra.mxu0 %v68
    %126 = vmatprep.subr.mxu0 0.0
    %127 = vmatpush1.msra.mxu0 %v67
    %128 = vmatprep.subr.mxu0 0.0
    %129 = vmatpush1.msra.mxu0 %v66
    %130 = vmatprep.subr.mxu0 0.0
    %131 = vmatpush2.msra.mxu0 0.0
    %132 = vmatprep.subr.mxu0 0.0
    %133 = vmatpush2.msra.mxu0 0.0
    %134 = vmatprep.subr.mxu0 0.0
    %135 = vmatpush2.msra.mxu0 0.0
    %136 = vmatprep.subr.mxu0 0.0
    %137 = vmatpush2.msra.mxu0 0.0
    %138 = vmatprep.subr.mxu0 0.0
    %139 = vmatpush2.msra.mxu0 0.0
    %140 = vmatprep.subr.mxu0 0.0
    %141 = vmatpush2.msra.mxu0 0.0
    %142 = vmatprep.subr.mxu0 0.0
    %143 = vmatpush2.msra.mxu0 0.0
    %144 = vmatprep.subr.mxu0 0.0
    %145 = vmatpush2.msra.mxu0 0.0
    %146 = vmatprep.subr.mxu0 0.0
    %147 = vmatpush2.msra.mxu0 0.0
    %148 = vmatprep.subr.mxu0 0.0
    %149 = vmatpush2.msra.mxu0 0.0
    %150 = vmatprep.subr.mxu0 0.0
    %151 = vmatpush2.msra.mxu0 0.0
    %152 = vmatprep.subr.mxu0 0.0
    %153 = vmatpush2.msra.mxu0 0.0
    %154 = vmatprep.subr.mxu0 0.0
    %155 = vmatpush2.msra.mxu0 0.0
    %156 = vmatprep.subr.mxu0 0.0
    %157 = vmatpush2.msra.mxu0 0.0
    %158 = vmatprep.subr.mxu0 0.0
    %159 = vmatpush2.msra.mxu0 0.0
    %160 = vmatprep.subr.mxu0 0.0
    %161 = vmatpush2.msra.mxu0 0.0
    %162 = vmatprep.mubr.f32.mxu0 0.0
    %163 = vmatmul.mubr.f32.gmra.mxu0 %v75
    %v164 = vpop.f32.mrf.mxu0
    %v165 = vadd.f32 %v72, %v164
    %v166 = vpop.f32.mrf.mxu0
    %167 = vmatprep.mubr.f32.mxu0 0.0
    %168 = vmatmul.mubr.f32.gmra.mxu0 %v78
    %v169 = vpop.f32.mrf.mxu0
    %v170 = vadd.f32 %v72, %v169
    %v171 = vpop.f32.mrf.mxu0
    %172 = vmatprep.mubr.f32.mxu0 0.0
    %173 = vmatmul.mubr.f32.gmra.mxu0 %v81
    %v174 = vpop.f32.mrf.mxu0
    %v175 = vadd.f32 %v72, %v174
    %v176 = vpop.f32.mrf.mxu0
    %177 = vmatprep.mubr.f32.mxu0 0.0
    %178 = vmatmul.mubr.f32.gmra.mxu0 %v84
    %v179 = vpop.f32.mrf.mxu0
    %v180 = vadd.f32 %v72, %v179
    %v181 = vpop.f32.mrf.mxu0
    %182 = vmatprep.mubr.f32.mxu0 0.0
    %183 = vmatmul.mubr.f32.gmra.mxu0 %v87
    %v184 = vpop.f32.mrf.mxu0
    %v185 = vadd.f32 %v72, %v184
    %v186 = vpop.f32.mrf.mxu0
    %187 = vmatprep.mubr.f32.mxu0 0.0
    %188 = vmatmul.mubr.f32.gmra.mxu0 %v90
    %v189 = vpop.f32.mrf.mxu0
    %v190 = vadd.f32 %v72, %v189
    %v191 = vpop.f32.mrf.mxu0
    %192 = vmatprep.mubr.f32.mxu0 0.0
    %193 = vmatmul.mubr.f32.gmra.mxu0 %v93
    %v194 = vpop.f32.mrf.mxu0
    %v195 = vadd.f32 %v72, %v194
    %v196 = vpop.f32.mrf.mxu0
    %197 = vmatprep.mubr.f32.mxu0 0.0
    %198 = vmatmul.mubr.f32.gmra.mxu0 %v96
    %v199 = vpop.f32.mrf.mxu0
    %v200 = vadd.f32 %v72, %v199
    %v201 = vpop.f32.mrf.mxu0
    %202 = vdwg.mxu0
    %203 = vadd.xlane.f32.xlu0 %v165
    %v204 = vpop.xlane.xlu0 %203
    %205 = vadd.xlane.f32.xlu0 %v170
    %v206 = vpop.xlane.xlu0 %205
    %207 = vadd.xlane.f32.xlu0 %v175
    %v208 = vpop.xlane.xlu0 %207
    %209 = vadd.xlane.f32.xlu0 %v180
    %v210 = vpop.xlane.xlu0 %209
    %211 = vadd.xlane.f32.xlu0 %v185
    %v212 = vpop.xlane.xlu0 %211
    %213 = vadd.xlane.f32.xlu0 %v190
    %v214 = vpop.xlane.xlu0 %213
    %215 = vadd.xlane.f32.xlu0 %v195
    %v216 = vpop.xlane.xlu0 %215
    %217 = vadd.xlane.f32.xlu0 %v200
    %v218 = vpop.xlane.xlu0 %217
    %v219 = vmul.f32 %v204, 0.0078125
    %v220 = vmul.f32 %v206, 0.0078125
    %v221 = vmul.f32 %v208, 0.0078125
    %v222 = vmul.f32 %v210, 0.0078125
    %v223 = vmul.f32 %v212, 0.0078125
    %v224 = vmul.f32 %v214, 0.0078125
    %v225 = vmul.f32 %v216, 0.0078125
    %v226 = vmul.f32 %v218, 0.0078125
    %v227 = vsub.f32 %v165, %v219
    %v228 = vsub.f32 %v170, %v220
    %v229 = vsub.f32 %v175, %v221
    %v230 = vsub.f32 %v180, %v222
    %v231 = vsub.f32 %v185, %v223
    %v232 = vsub.f32 %v190, %v224
    %v233 = vsub.f32 %v195, %v225
    %v234 = vsub.f32 %v200, %v226
    %v235 = vmul.f32 %v227, %v227
    %v236 = vmul.f32 %v228, %v228
    %v237 = vmul.f32 %v229, %v229
    %v238 = vmul.f32 %v230, %v230
    %v239 = vmul.f32 %v231, %v231
    %v240 = vmul.f32 %v232, %v232
    %v241 = vmul.f32 %v233, %v233
    %v242 = vmul.f32 %v234, %v234
    %243 = vadd.xlane.f32.xlu0 %v235
    %v244 = vpop.xlane.xlu0 %243
    %245 = vadd.xlane.f32.xlu0 %v236
    %v246 = vpop.xlane.xlu0 %245
    %247 = vadd.xlane.f32.xlu0 %v237
    %v248 = vpop.xlane.xlu0 %247
    %249 = vadd.xlane.f32.xlu0 %v238
    %v250 = vpop.xlane.xlu0 %249
    %251 = vadd.xlane.f32.xlu0 %v239
    %v252 = vpop.xlane.xlu0 %251
    %253 = vadd.xlane.f32.xlu0 %v240
    %v254 = vpop.xlane.xlu0 %253
    %255 = vadd.xlane.f32.xlu0 %v241
    %v256 = vpop.xlane.xlu0 %255
    %257 = vadd.xlane.f32.xlu0 %v242
    %v258 = vpop.xlane.xlu0 %257
    %v259 = vmul.f32 %v244, 0.0078125
    %v260 = vmul.f32 %v246, 0.0078125
    %v261 = vmul.f32 %v248, 0.0078125
    %v262 = vmul.f32 %v250, 0.0078125
    %v263 = vmul.f32 %v252, 0.0078125
    %v264 = vmul.f32 %v254, 0.0078125
    %v265 = vmul.f32 %v256, 0.0078125
    %v266 = vmul.f32 %v258, 0.0078125
    %v267 = vadd.f32 %v259, 1e-05
    %v268 = vadd.f32 %v260, 1e-05
    %v269 = vadd.f32 %v261, 1e-05
    %v270 = vadd.f32 %v262, 1e-05
    %v271 = vadd.f32 %v263, 1e-05
    %v272 = vadd.f32 %v264, 1e-05
    %v273 = vadd.f32 %v265, 1e-05
    %v274 = vadd.f32 %v266, 1e-05
    %v275 = vrsqrt.pop %v267
    %v276 = vrsqrt.pop %v268
    %v277 = vrsqrt.pop %v269
    %v278 = vrsqrt.pop %v270
    %v279 = vrsqrt.pop %v271
    %v280 = vrsqrt.pop %v272
    %v281 = vrsqrt.pop %v273
    %v282 = vrsqrt.pop %v274
    %v283 = vmul.f32 %v227, %v275
    %v284 = vmul.f32 %v228, %v276
    %v285 = vmul.f32 %v229, %v277
    %v286 = vmul.f32 %v230, %v278
    %v287 = vmul.f32 %v231, %v279
    %v288 = vmul.f32 %v232, %v280
    %v289 = vmul.f32 %v233, %v281
    %v290 = vmul.f32 %v234, %v282
    %v291 = vlaneseq
    %v292 = vshrl.u32 %v291, 7
    %v293 = vsub.s32 0, %v292
    %v294 = vrot.slane %v61, %v293
    %v295 = vmul.f32 %v283, %v294
    %v296 = vmul.f32 %v284, %v294
    %v297 = vmul.f32 %v285, %v294
    %v298 = vmul.f32 %v286, %v294
    %v299 = vmul.f32 %v287, %v294
    %v300 = vmul.f32 %v288, %v294
    %v301 = vmul.f32 %v289, %v294
    %v302 = vmul.f32 %v290, %v294
    %v303 = vlaneseq
    %v304 = vshrl.u32 %v303, 7
    %v305 = vsub.s32 0, %v304
    %v306 = vrot.slane %v62, %v305
    %v307 = vadd.f32 %v295, %v306
    %v308 = vadd.f32 %v296, %v306
    %v309 = vadd.f32 %v297, %v306
    %v310 = vadd.f32 %v298, %v306
    %v311 = vadd.f32 %v299, %v306
    %v312 = vadd.f32 %v300, %v306
    %v313 = vadd.f32 %v301, %v306
    %v314 = vadd.f32 %v302, %v306
    %v315 = vmax.f32 %v307, 0.0
    %v316 = vmax.f32 %v308, 0.0
    %v317 = vmax.f32 %v309, 0.0
    %v318 = vmax.f32 %v310, 0.0
    %v319 = vmax.f32 %v311, 0.0
    %v320 = vmax.f32 %v312, 0.0
    %v321 = vmax.f32 %v313, 0.0
    %v322 = vmax.f32 %v314, 0.0
    %v323 = vld [vmem:[#allocation2] sm:$0xff]
    %v324 = vld [vmem:[#allocation2 + $0x8] sm:$0xff]
    %v325 = vld [vmem:[#allocation2 + $0x10] sm:$0xff]
    %v326 = vld [vmem:[#allocation2 + $0x18] sm:$0xff]
    %v327 = vld [vmem:[#allocation2 + $0x20] sm:$0xff]
    %v328 = vld [vmem:[#allocation2 + $0x28] sm:$0xff]
    %v329 = vld [vmem:[#allocation2 + $0x30] sm:$0xff]
    %v330 = vld [vmem:[#allocation2 + $0x38] sm:$0xff]
    %v331 = vld [vmem:[#allocation2 + $0x40] sm:$0xff]
    %v332 = vld [vmem:[#allocation2 + $0x48] sm:$0xff]
    %v333 = vld [vmem:[#allocation2 + $0x50] sm:$0xff]
    %v334 = vld [vmem:[#allocation2 + $0x58] sm:$0xff]
    %v335 = vld [vmem:[#allocation2 + $0x60] sm:$0xff]
    %v336 = vld [vmem:[#allocation2 + $0x68] sm:$0xff]
    %v337 = vld [vmem:[#allocation2 + $0x70] sm:$0xff]
    %v338 = vld [vmem:[#allocation2 + $0x78] sm:$0xff]
    %v339 = vlaneseq
    %v340 = vshrl.u32 %v339, 7
    %v341 = vsub.s32 0, %v340
    %v342 = vrot.slane %v63, %v341
    %343 = vmatprep.subr.mxu0 0.0
    %344 = vmatpush1.msra.mxu0 %v338
    %345 = vmatprep.subr.mxu0 0.0
    %346 = vmatpush1.msra.mxu0 %v337
    %347 = vmatprep.subr.mxu0 0.0
    %348 = vmatpush1.msra.mxu0 %v336
    %349 = vmatprep.subr.mxu0 0.0
    %350 = vmatpush1.msra.mxu0 %v335
    %351 = vmatprep.subr.mxu0 0.0
    %352 = vmatpush1.msra.mxu0 %v334
    %353 = vmatprep.subr.mxu0 0.0
    %354 = vmatpush1.msra.mxu0 %v333
    %355 = vmatprep.subr.mxu0 0.0
    %356 = vmatpush1.msra.mxu0 %v332
    %357 = vmatprep.subr.mxu0 0.0
    %358 = vmatpush1.msra.mxu0 %v331
    %359 = vmatprep.subr.mxu0 0.0
    %360 = vmatpush1.msra.mxu0 %v330
    %361 = vmatprep.subr.mxu0 0.0
    %362 = vmatpush1.msra.mxu0 %v329
    %363 = vmatprep.subr.mxu0 0.0
    %364 = vmatpush1.msra.mxu0 %v328
    %365 = vmatprep.subr.mxu0 0.0
    %366 = vmatpush1.msra.mxu0 %v327
    %367 = vmatprep.subr.mxu0 0.0
    %368 = vmatpush1.msra.mxu0 %v326
    %369 = vmatprep.subr.mxu0 0.0
    %370 = vmatpush1.msra.mxu0 %v325
    %371 = vmatprep.subr.mxu0 0.0
    %372 = vmatpush1.msra.mxu0 %v324
    %373 = vmatprep.subr.mxu0 0.0
    %374 = vmatpush1.msra.mxu0 %v323
    %375 = vmatprep.subr.mxu0 0.0
    %376 = vmatpush2.msra.mxu0 0.0
    %377 = vmatprep.subr.mxu0 0.0
    %378 = vmatpush2.msra.mxu0 0.0
    %379 = vmatprep.subr.mxu0 0.0
    %380 = vmatpush2.msra.mxu0 0.0
    %381 = vmatprep.subr.mxu0 0.0
    %382 = vmatpush2.msra.mxu0 0.0
    %383 = vmatprep.subr.mxu0 0.0
    %384 = vmatpush2.msra.mxu0 0.0
    %385 = vmatprep.subr.mxu0 0.0
    %386 = vmatpush2.msra.mxu0 0.0
    %387 = vmatprep.subr.mxu0 0.0
    %388 = vmatpush2.msra.mxu0 0.0
    %389 = vmatprep.subr.mxu0 0.0
    %390 = vmatpush2.msra.mxu0 0.0
    %391 = vmatprep.subr.mxu0 0.0
    %392 = vmatpush2.msra.mxu0 0.0
    %393 = vmatprep.subr.mxu0 0.0
    %394 = vmatpush2.msra.mxu0 0.0
    %395 = vmatprep.subr.mxu0 0.0
    %396 = vmatpush2.msra.mxu0 0.0
    %397 = vmatprep.subr.mxu0 0.0
    %398 = vmatpush2.msra.mxu0 0.0
    %399 = vmatprep.subr.mxu0 0.0
    %400 = vmatpush2.msra.mxu0 0.0
    %401 = vmatprep.subr.mxu0 0.0
    %402 = vmatpush2.msra.mxu0 0.0
    %403 = vmatprep.subr.mxu0 0.0
    %404 = vmatpush2.msra.mxu0 0.0
    %405 = vmatprep.subr.mxu0 0.0
    %406 = vmatpush2.msra.mxu0 0.0
    %407 = vmatprep.mubr.f32.mxu0 0.0
    %408 = vmatmul.mubr.f32.gmra.mxu0 %v315
    %v409 = vpop.f32.mrf.mxu0
    %v410 = vadd.f32 %v342, %v409
    %v411 = vpop.f32.mrf.mxu0
    %412 = vmatprep.mubr.f32.mxu0 0.0
    %413 = vmatmul.mubr.f32.gmra.mxu0 %v316
    %v414 = vpop.f32.mrf.mxu0
    %v415 = vadd.f32 %v342, %v414
    %v416 = vpop.f32.mrf.mxu0
    %417 = vmatprep.mubr.f32.mxu0 0.0
    %418 = vmatmul.mubr.f32.gmra.mxu0 %v317
    %v419 = vpop.f32.mrf.mxu0
    %v420 = vadd.f32 %v342, %v419
    %v421 = vpop.f32.mrf.mxu0
    %422 = vmatprep.mubr.f32.mxu0 0.0
    %423 = vmatmul.mubr.f32.gmra.mxu0 %v318
    %v424 = vpop.f32.mrf.mxu0
    %v425 = vadd.f32 %v342, %v424
    %v426 = vpop.f32.mrf.mxu0
    %427 = vmatprep.mubr.f32.mxu0 0.0
    %428 = vmatmul.mubr.f32.gmra.mxu0 %v319
    %v429 = vpop.f32.mrf.mxu0
    %v430 = vadd.f32 %v342, %v429
    %v431 = vpop.f32.mrf.mxu0
    %432 = vmatprep.mubr.f32.mxu0 0.0
    %433 = vmatmul.mubr.f32.gmra.mxu0 %v320
    %v434 = vpop.f32.mrf.mxu0
    %v435 = vadd.f32 %v342, %v434
    %v436 = vpop.f32.mrf.mxu0
    %437 = vmatprep.mubr.f32.mxu0 0.0
    %438 = vmatmul.mubr.f32.gmra.mxu0 %v321
    %v439 = vpop.f32.mrf.mxu0
    %v440 = vadd.f32 %v342, %v439
    %v441 = vpop.f32.mrf.mxu0
    %442 = vmatprep.mubr.f32.mxu0 0.0
    %443 = vmatmul.mubr.f32.gmra.mxu0 %v322
    %v444 = vpop.f32.mrf.mxu0
    %v445 = vadd.f32 %v342, %v444
    %v446 = vpop.f32.mrf.mxu0
    %447 = vdwg.mxu0
    %448 = vadd.xlane.f32.xlu0 %v410
    %v449 = vpop.xlane.xlu0 %448
    %450 = vadd.xlane.f32.xlu0 %v415
    %v451 = vpop.xlane.xlu0 %450
    %452 = vadd.xlane.f32.xlu0 %v420
    %v453 = vpop.xlane.xlu0 %452
    %454 = vadd.xlane.f32.xlu0 %v425
    %v455 = vpop.xlane.xlu0 %454
    %456 = vadd.xlane.f32.xlu0 %v430
    %v457 = vpop.xlane.xlu0 %456
    %458 = vadd.xlane.f32.xlu0 %v435
    %v459 = vpop.xlane.xlu0 %458
    %460 = vadd.xlane.f32.xlu0 %v440
    %v461 = vpop.xlane.xlu0 %460
    %462 = vadd.xlane.f32.xlu0 %v445
    %v463 = vpop.xlane.xlu0 %462
    %v464 = vmul.f32 %v449, 0.0078125
    %v465 = vmul.f32 %v451, 0.0078125
    %v466 = vmul.f32 %v453, 0.0078125
    %v467 = vmul.f32 %v455, 0.0078125
    %v468 = vmul.f32 %v457, 0.0078125
    %v469 = vmul.f32 %v459, 0.0078125
    %v470 = vmul.f32 %v461, 0.0078125
    %v471 = vmul.f32 %v463, 0.0078125
    %v472 = vsub.f32 %v410, %v464
    %v473 = vsub.f32 %v415, %v465
    %v474 = vsub.f32 %v420, %v466
    %v475 = vsub.f32 %v425, %v467
    %v476 = vsub.f32 %v430, %v468
    %v477 = vsub.f32 %v435, %v469
    %v478 = vsub.f32 %v440, %v470
    %v479 = vsub.f32 %v445, %v471
    %v480 = vmul.f32 %v472, %v472
    %v481 = vmul.f32 %v473, %v473
    %v482 = vmul.f32 %v474, %v474
    %v483 = vmul.f32 %v475, %v475
    %v484 = vmul.f32 %v476, %v476
    %v485 = vmul.f32 %v477, %v477
    %v486 = vmul.f32 %v478, %v478
    %v487 = vmul.f32 %v479, %v479
    %488 = vadd.xlane.f32.xlu0 %v480
    %v489 = vpop.xlane.xlu0 %488
    %490 = vadd.xlane.f32.xlu0 %v481
    %v491 = vpop.xlane.xlu0 %490
    %492 = vadd.xlane.f32.xlu0 %v482
    %v493 = vpop.xlane.xlu0 %492
    %494 = vadd.xlane.f32.xlu0 %v483
    %v495 = vpop.xlane.xlu0 %494
    %496 = vadd.xlane.f32.xlu0 %v484
    %v497 = vpop.xlane.xlu0 %496
    %498 = vadd.xlane.f32.xlu0 %v485
    %v499 = vpop.xlane.xlu0 %498
    %500 = vadd.xlane.f32.xlu0 %v486
    %v501 = vpop.xlane.xlu0 %500
    %502 = vadd.xlane.f32.xlu0 %v487
    %v503 = vpop.xlane.xlu0 %502
    %v504 = vmul.f32 %v489, 0.0078125
    %v505 = vmul.f32 %v491, 0.0078125
    %v506 = vmul.f32 %v493, 0.0078125
    %v507 = vmul.f32 %v495, 0.0078125
    %v508 = vmul.f32 %v497, 0.0078125
    %v509 = vmul.f32 %v499, 0.0078125
    %v510 = vmul.f32 %v501, 0.0078125
    %v511 = vmul.f32 %v503, 0.0078125
    %v512 = vadd.f32 %v504, 1e-05
    %v513 = vadd.f32 %v505, 1e-05
    %v514 = vadd.f32 %v506, 1e-05
    %v515 = vadd.f32 %v507, 1e-05
    %v516 = vadd.f32 %v508, 1e-05
    %v517 = vadd.f32 %v509, 1e-05
    %v518 = vadd.f32 %v510, 1e-05
    %v519 = vadd.f32 %v511, 1e-05
    %v520 = vrsqrt.pop %v512
    %v521 = vrsqrt.pop %v513
    %v522 = vrsqrt.pop %v514
    %v523 = vrsqrt.pop %v515
    %v524 = vrsqrt.pop %v516
    %v525 = vrsqrt.pop %v517
    %v526 = vrsqrt.pop %v518
    %v527 = vrsqrt.pop %v519
    %v528 = vmul.f32 %v472, %v520
    %v529 = vmul.f32 %v473, %v521
    %v530 = vmul.f32 %v474, %v522
    %v531 = vmul.f32 %v475, %v523
    %v532 = vmul.f32 %v476, %v524
    %v533 = vmul.f32 %v477, %v525
    %v534 = vmul.f32 %v478, %v526
    %v535 = vmul.f32 %v479, %v527
    %v536 = vlaneseq
    %v537 = vshrl.u32 %v536, 7
    %v538 = vsub.s32 0, %v537
    %v539 = vrot.slane %v64, %v538
    %v540 = vmul.f32 %v528, %v539
    %v541 = vmul.f32 %v529, %v539
    %v542 = vmul.f32 %v530, %v539
    %v543 = vmul.f32 %v531, %v539
    %v544 = vmul.f32 %v532, %v539
    %v545 = vmul.f32 %v533, %v539
    %v546 = vmul.f32 %v534, %v539
    %v547 = vmul.f32 %v535, %v539
    %v548 = vlaneseq
    %v549 = vshrl.u32 %v548, 7
    %v550 = vsub.s32 0, %v549
    %v551 = vrot.slane %v65, %v550
    %v552 = vadd.f32 %v540, %v551
    %v553 = vadd.f32 %v541, %v551
    %v554 = vadd.f32 %v542, %v551
    %v555 = vadd.f32 %v543, %v551
    %v556 = vadd.f32 %v544, %v551
    %v557 = vadd.f32 %v545, %v551
    %v558 = vadd.f32 %v546, %v551
    %v559 = vadd.f32 %v547, %v551
    %v560 = vmax.f32 %v552, 0.0
    %v561 = vmax.f32 %v553, 0.0
    %v562 = vmax.f32 %v554, 0.0
    %v563 = vmax.f32 %v555, 0.0
    %v564 = vmax.f32 %v556, 0.0
    %v565 = vmax.f32 %v557, 0.0
    %v566 = vmax.f32 %v558, 0.0
    %v567 = vmax.f32 %v559, 0.0
    %v568 = vld [vmem:[#allocation5] sm:$0xff]
    %v569 = vld [vmem:[#allocation5 + $0x8] sm:$0xff]
    %v570 = vld [vmem:[#allocation5 + $0x10] sm:$0xff]
    %v571 = vld [vmem:[#allocation5 + $0x18] sm:$0xff]
    %v572 = vld [vmem:[#allocation5 + $0x20] sm:$0xff]
    %v573 = vld [vmem:[#allocation5 + $0x28] sm:$0xff]
    %v574 = vld [vmem:[#allocation5 + $0x30] sm:$0xff]
    %v575 = vld [vmem:[#allocation5 + $0x38] sm:$0xff]
    %v576 = vld [vmem:[#allocation5 + $0x40] sm:$0xff]
    %v577 = vld [vmem:[#allocation5 + $0x48] sm:$0xff]
    %v578 = vld [vmem:[#allocation5 + $0x50] sm:$0xff]
    %v579 = vld [vmem:[#allocation5 + $0x58] sm:$0xff]
    %v580 = vld [vmem:[#allocation5 + $0x60] sm:$0xff]
    %v581 = vld [vmem:[#allocation5 + $0x68] sm:$0xff]
    %v582 = vld [vmem:[#allocation5 + $0x70] sm:$0xff]
    %v583 = vld [vmem:[#allocation5 + $0x78] sm:$0xff]
    %v584 = vld [vmem:[%s5] sm:$0x1]
    %v586 = vlaneseq
    %v587 = vshrl.u32 %v586, 7
    %v588 = vsub.s32 0, %v587
    %v589 = vrot.slane %v584, %v588
    %591 = vmatprep.subr.mxu0 0.0
    %592 = vmatpush1.msra.mxu0 %v583
    %593 = vmatprep.subr.mxu0 0.0
    %594 = vmatpush1.msra.mxu0 %v582
    %595 = vmatprep.subr.mxu0 0.0
    %596 = vmatpush1.msra.mxu0 %v581
    %597 = vmatprep.subr.mxu0 0.0
    %598 = vmatpush1.msra.mxu0 %v580
    %599 = vmatprep.subr.mxu0 0.0
    %600 = vmatpush1.msra.mxu0 %v579
    %601 = vmatprep.subr.mxu0 0.0
    %602 = vmatpush1.msra.mxu0 %v578
    %603 = vmatprep.subr.mxu0 0.0
    %604 = vmatpush1.msra.mxu0 %v577
    %605 = vmatprep.subr.mxu0 0.0
    %606 = vmatpush1.msra.mxu0 %v576
    %607 = vmatprep.subr.mxu0 0.0
    %608 = vmatpush1.msra.mxu0 %v575
    %609 = vmatprep.subr.mxu0 0.0
    %610 = vmatpush1.msra.mxu0 %v574
    %611 = vmatprep.subr.mxu0 0.0
    %612 = vmatpush1.msra.mxu0 %v573
    %613 = vmatprep.subr.mxu0 0.0
    %614 = vmatpush1.msra.mxu0 %v572
    %615 = vmatprep.subr.mxu0 0.0
    %616 = vmatpush1.msra.mxu0 %v571
    %617 = vmatprep.subr.mxu0 0.0
    %618 = vmatpush1.msra.mxu0 %v570
    %619 = vmatprep.subr.mxu0 0.0
    %620 = vmatpush1.msra.mxu0 %v569
    %621 = vmatprep.subr.mxu0 0.0
    %622 = vmatpush1.msra.mxu0 %v568
    %623 = vmatprep.subr.mxu0 0.0
    %624 = vmatpush2.msra.mxu0 0.0
    %625 = vmatprep.subr.mxu0 0.0
    %626 = vmatpush2.msra.mxu0 0.0
    %627 = vmatprep.subr.mxu0 0.0
    %628 = vmatpush2.msra.mxu0 0.0
    %629 = vmatprep.subr.mxu0 0.0
    %630 = vmatpush2.msra.mxu0 0.0
    %631 = vmatprep.subr.mxu0 0.0
    %632 = vmatpush2.msra.mxu0 0.0
    %633 = vmatprep.subr.mxu0 0.0
    %634 = vmatpush2.msra.mxu0 0.0
    %635 = vmatprep.subr.mxu0 0.0
    %636 = vmatpush2.msra.mxu0 0.0
    %637 = vmatprep.subr.mxu0 0.0
    %638 = vmatpush2.msra.mxu0 0.0
    %639 = vmatprep.subr.mxu0 0.0
    %640 = vmatpush2.msra.mxu0 0.0
    %641 = vmatprep.subr.mxu0 0.0
    %642 = vmatpush2.msra.mxu0 0.0
    %643 = vmatprep.subr.mxu0 0.0
    %644 = vmatpush2.msra.mxu0 0.0
    %645 = vmatprep.subr.mxu0 0.0
    %646 = vmatpush2.msra.mxu0 0.0
    %647 = vmatprep.subr.mxu0 0.0
    %648 = vmatpush2.msra.mxu0 0.0
    %649 = vmatprep.subr.mxu0 0.0
    %650 = vmatpush2.msra.mxu0 0.0
    %651 = vmatprep.subr.mxu0 0.0
    %652 = vmatpush2.msra.mxu0 0.0
    %653 = vmatprep.subr.mxu0 0.0
    %654 = vmatpush2.msra.mxu0 0.0
    %655 = vmatprep.mubr.f32.mxu0 0.0
    %656 = vmatmul.mubr.f32.gmra.mxu0 %v560
    %v657 = vpop.f32.mrf.mxu0
    %v658 = vadd.f32 %v589, %v657
    %v659 = vpop.f32.mrf.mxu0
    %660 = vmatprep.mubr.f32.mxu0 0.0
    %661 = vmatmul.mubr.f32.gmra.mxu0 %v561
    %v662 = vpop.f32.mrf.mxu0
    %v663 = vadd.f32 %v589, %v662
    %v664 = vpop.f32.mrf.mxu0
    %665 = vmatprep.mubr.f32.mxu0 0.0
    %666 = vmatmul.mubr.f32.gmra.mxu0 %v562
    %v667 = vpop.f32.mrf.mxu0
    %v668 = vadd.f32 %v589, %v667
    %v669 = vpop.f32.mrf.mxu0
    %670 = vmatprep.mubr.f32.mxu0 0.0
    %671 = vmatmul.mubr.f32.gmra.mxu0 %v563
    %v672 = vpop.f32.mrf.mxu0
    %v673 = vadd.f32 %v589, %v672
    %v674 = vpop.f32.mrf.mxu0
    %675 = vmatprep.mubr.f32.mxu0 0.0
    %676 = vmatmul.mubr.f32.gmra.mxu0 %v564
    %v677 = vpop.f32.mrf.mxu0
    %v678 = vadd.f32 %v589, %v677
    %v679 = vpop.f32.mrf.mxu0
    %680 = vmatprep.mubr.f32.mxu0 0.0
    %681 = vmatmul.mubr.f32.gmra.mxu0 %v565
    %v682 = vpop.f32.mrf.mxu0
    %v683 = vadd.f32 %v589, %v682
    %v684 = vpop.f32.mrf.mxu0
    %685 = vmatprep.mubr.f32.mxu0 0.0
    %686 = vmatmul.mubr.f32.gmra.mxu0 %v566
    %v687 = vpop.f32.mrf.mxu0
    %v688 = vadd.f32 %v589, %v687
    %v689 = vpop.f32.mrf.mxu0
    %690 = vmatprep.mubr.f32.mxu0 0.0
    %691 = vmatmul.mubr.f32.gmra.mxu0 %v567
    %v692 = vpop.f32.mrf.mxu0
    %v693 = vadd.f32 %v589, %v692
    %v694 = vpop.f32.mrf.mxu0
    %695 = vdwg.mxu0
    %v696 = vtanh.pop %v658
    %v697 = vtanh.pop %v663
    %v698 = vtanh.pop %v668
    %v699 = vtanh.pop %v673
    %v700 = vtanh.pop %v678
    %v701 = vtanh.pop %v683
    %v702 = vtanh.pop %v688
    %v703 = vtanh.pop %v693
    %704 = vst [vmem:[#allocation7] sm:$0xff] %v696
    %705 = vst [vmem:[#allocation7 + $0x8] sm:$0xff] %v697
    %706 = vst [vmem:[#allocation7 + $0x10] sm:$0xff] %v698
    %707 = vst [vmem:[#allocation7 + $0x18] sm:$0xff] %v699
    %708 = vst [vmem:[#allocation7 + $0x20] sm:$0xff] %v700
    %709 = vst [vmem:[#allocation7 + $0x28] sm:$0xff] %v701
    %710 = vst [vmem:[#allocation7 + $0x30] sm:$0xff] %v702
    %711 = vst [vmem:[#allocation7 + $0x38] sm:$0xff] %v703
    // Predicated region
    $region34: #{tpu_custom_call.1} parent=1 // pred_check
      _
    $region35: #{tpu_custom_call.1} parent=1 // pred_check_branch
      %713 = sbr.rel (0) target = $region37
    $region36: #{tpu_custom_call.1} parent=1 // pred_region
      %s715 = ssub.s32 1024, 1024
      %716 = vsyncadd [#allocation4], %s715
      %s717 = sshll.u32 [#allocation7], 4
      %s718 = int_to_ptr.vmem [resolvable:$true] %s717
      %723 = dma.vmem_to_hbm [thread:$0]  %s718, 1024, %s6, [#allocation4], 128, 128, 8
    $region37: #{tpu_custom_call.1} parent=1 // pred_fallthru
      _
    // Predicated region
    $region38: #{tpu_custom_call.1} parent=1 // pred_check
      _
    $region39: #{tpu_custom_call.1} parent=1 // pred_check_branch
      %725 = sbr.rel (0) target = $region41
    $region40: #{tpu_custom_call.1} parent=1 // pred_region
      %726 = dma.done [#allocation4], 1024
    $region41: #{tpu_custom_call.1} parent=1 // pred_fallthru
      _
    %727 = vsyncpa [#allocation3], 1
    %728 = vsyncpa [#allocation6], 1
    %729 = vsyncpa [#allocation4], 1

</llo_original>
